<compile_context>
chip_gen: v7x
topology: tpu7x:2x2x1
jax: 0.10.0
libtpu: 0.0.40
codegen_flags: <defaults>
</compile_context>

<pallas_src>
import functools

import jax
import jax.numpy as jnp
from jax import lax
from jax.experimental import pallas as pl
from jax.experimental.pallas import tpu as pltpu

try:
    # Keep f32 matmuls full-precision everywhere (reference and interpret-mode execution);
    # inside Mosaic an f32 dot is full precision regardless.
    jax.config.update("jax_default_matmul_precision", "highest")
except Exception:
    pass

CURVATURE = 1.0          # PoincareBall curvature c
BALL_EPS = 1e-15         # clamp_min used by norms in the reference impl
PROJ_EPS = 4e-3          # float32 boundary epsilon used by ball.project


# ----------------------------------------------------------------------------
# Pure-JAX faithful reference (mirrors the PyTorch module's math, used for checks)
# ----------------------------------------------------------------------------
def _poincare_linear_reference(x, z, r, c):
    sqrt_c = c ** 0.5

    # expmap0 (dim=-1)
    x_norm = jnp.maximum(jnp.sqrt(jnp.sum(x * x, axis=-1, keepdims=True)), BALL_EPS)
    xe = jnp.tanh(sqrt_c * x_norm) * x / (sqrt_c * x_norm)

    # Poincare hyperplane distances (HNN++ Poincare FC)
    lam = 2.0 / (1.0 - c * jnp.sum(xe * xe, axis=-1, keepdims=True))
    z_norm = jnp.maximum(jnp.sqrt(jnp.sum(z * z, axis=0, keepdims=True)), BALL_EPS)
    wx = jnp.dot(xe, z, preferred_element_type=jnp.float32,
                 precision=jax.lax.Precision.HIGHEST)
    two_cr = 2.0 * sqrt_c * r
    inner = (sqrt_c * lam / z_norm) * wx * jnp.cosh(two_cr) \
            - (lam - 1.0) * jnp.sinh(two_cr)
    v = (2.0 * z_norm / sqrt_c) * jnp.arcsinh(inner)

    # map signed distances back onto the ball
    w = (1.0 / sqrt_c) * jnp.sinh(sqrt_c * v)
    w_sq = jnp.sum(w * w, axis=-1, keepdims=True)
    y = w / (1.0 + jnp.sqrt(1.0 + c * w_sq))

    # project strictly inside the ball
    maxnorm = (1.0 - PROJ_EPS) / sqrt_c
    y_norm = jnp.maximum(jnp.sqrt(jnp.sum(y * y, axis=-1, keepdims=True)), BALL_EPS)
    y = jnp.where(y_norm > maxnorm, y / y_norm * maxnorm, y)

    # logmap0 (dim=-1)
    y_norm = jnp.maximum(jnp.sqrt(jnp.sum(y * y, axis=-1, keepdims=True)), BALL_EPS)
    return jnp.arctanh(sqrt_c * y_norm) * y / (sqrt_c * y_norm)


# ----------------------------------------------------------------------------
# Pallas kernel: one batch tile per grid step
# ----------------------------------------------------------------------------
def poincare_linear_kernel(x_ref, z_ref, cpk_ref, o_ref, *, c):
    sqrt_c = c ** 0.5
    inv_sqrt_c = 1.0 / sqrt_c

    x = x_ref[...].astype(jnp.float32)       # (TB, Din_p)
    z = z_ref[...]                           # (Din_p, Dout_p), resident across grid steps
    c1 = cpk_ref[0:1, :]                     # (1, Dout_p)  sqrt_c*cosh(2*sqrt_c*r)/||z|| (0 in pad cols)
    c2 = cpk_ref[1:2, :]                     # (1, Dout_p)  sinh(2*sqrt_c*r)
    c3 = cpk_ref[2:3, :]                     # (1, Dout_p)  2*||z||/sqrt_c

    # ---- expmap0: xe = tanh(sqrt_c*||x||) * x / (sqrt_c*||x||)  (per-row scale only) ----
    x_sq = jnp.sum(x * x, axis=-1, keepdims=True)               # (TB, 1)
    s = jnp.maximum(x_sq, BALL_EPS * BALL_EPS)
    inv_xn = lax.rsqrt(s)                                       # 1/||x||
    x_norm = s * inv_xn                                         # ||x||
    t = jnp.tanh(sqrt_c * x_norm)                               # (TB, 1)
    scale = t * inv_xn * inv_sqrt_c                             # xe = scale * x

    # lambda_x = 2 / (1 - c*||xe||^2); c*||xe||^2 == tanh^2(sqrt_c*||x||)
    # (denominator clamped so tanh rounding to exactly 1.0 cannot produce inf/NaN)
    lam = 2.0 / jnp.maximum(1.0 - t * t, BALL_EPS)              # (TB, 1)
    lam_scale = lam * scale                                     # expmap0 scale folded into lam

    # ---- Poincare hyperplane distances ----
    # xe @ z == scale * (x @ z): feed x straight into the MXU, fold scale into lam_scale.
    wx = jnp.dot(x, z, preferred_element_type=jnp.float32)      # (TB, Dout_p), f32 full precision
    inner = lam_scale * wx * c1 - (lam - 1.0) * c2

    # arcsinh(u) = sign(u) * log(|u| + sqrt(u^2 + 1))   (log/sqrt only -> Mosaic-lowerable)
    au = jnp.abs(inner)
    asinh = jnp.log(au + jnp.sqrt(au * au + 1.0))
    asinh = jnp.where(inner < 0.0, -asinh, asinh)
    v = c3 * asinh                                              # (TB, Dout_p)

    # ---- back onto the ball: w = sinh(sqrt_c*v)/sqrt_c; y = w/(1+sqrt(1+c*||w||^2)) ----
    e = jnp.exp(sqrt_c * v)
    w = (0.5 * inv_sqrt_c) * (e - 1.0 / e)                      # exact reciprocal (accuracy)
    w_sq = jnp.sum(w * w, axis=-1, keepdims=True)               # (TB, 1)
    inv_den = 1.0 / (1.0 + jnp.sqrt(1.0 + c * w_sq))            # per-row

    # ---- project inside the ball + logmap0, folded into one per-row scale of w ----
    maxnorm = (1.0 - PROJ_EPS) * inv_sqrt_c
    y_norm = jnp.maximum(jnp.sqrt(w_sq) * inv_den, BALL_EPS)    # ||y|| (derived, no 2nd reduce)
    proj = jnp.minimum(maxnorm / y_norm, 1.0)                   # projection factor
    yn = y_norm * proj                                          # post-projection norm (reused)
    u = sqrt_c * yn
    # arctanh(u)/u with arctanh(u) = 0.5*log((1+u)/(1-u)); u <= 1 - PROJ_EPS by construction.
    log_scale = 0.5 * jnp.log((1.0 + u) / (1.0 - u)) / u
    o_ref[...] = (w * (inv_den * proj * log_scale)).astype(o_ref.dtype)


# ----------------------------------------------------------------------------
# Wrapper: padding, constant precompute, batch-tiled pallas_call
# ----------------------------------------------------------------------------
def _round_up(n, m):
    return ((n + m - 1) // m) * m


def _cdiv(a, b):
    return -(-a // b)


def _vmem_capacity_bytes():
    try:
        return int(pltpu.get_tpu_info().vmem_capacity_bytes)
    except Exception:
        return 64 * 1024 * 1024   # conservative fallback (v7x per-core VMEM)


def poincare_linear(x, z, bias, *, c=CURVATURE, block_b=None):
    """x: (B, Din); z: (Din, Dout); bias: (Dout,). Returns (B, Dout)."""
    B, Din = x.shape
    Dout = z.shape[1]
    c = float(c)
    sqrt_c = c ** 0.5
    f32 = jnp.float32
    itm = jnp.dtype(x.dtype).itemsize

    # Lane-dense padding (128) for matmul + unmasked stores; inert for the math.
    Din_p = _round_up(Din, 128)
    Dout_p = _round_up(Dout, 128)

    # ---- generation-aware VMEM budget + batch-tile sizing ----
    cap = _vmem_capacity_bytes()
    budget = max(16 * 1024 * 1024, cap - 24 * 1024 * 1024)

    def vmem_need(tb):
        resident = 4 * (Din_p * Dout_p + 8 * Dout_p)              # z (single-buffered) + packed consts
        streams = 2 * tb * Din_p * itm + 2 * tb * Dout_p * itm    # double-buffered x & out tiles
        temps = 4 * 4 * tb * Dout_p                               # (TB, Dout) f32 elementwise temporaries
        rowtmp = 8 * 4 * tb                                       # (TB, 1) per-row scalars
        return resident + streams + temps + rowtmp

    if block_b is None:
        tb_max = 1024
        while tb_max > 8 and vmem_need(tb_max) > budget:
            tb_max //= 2
        tb_max = max(8, tb_max)
        num_tiles = max(1, _cdiv(B, tb_max))
        if num_tiles < 2 and B > 8:
            num_tiles = 2                       # keep both v7x TensorCores busy
        block_b = _round_up(_cdiv(B, num_tiles), 8)   # balanced tiles, no near-empty last tile
    Bp = _round_up(B, block_b)

    # ---- padding (skipped when already aligned) ----
    if (B, Din) == (Bp, Din_p):
        xp = x
    else:
        xp = jnp.zeros((Bp, Din_p), x.dtype).at[:B, :Din].set(x)
    if (Din, Dout) == (Din_p, Dout_p):
        zp = z.astype(f32)
    else:
        zp = jnp.zeros((Din_p, Dout_p), f32).at[:Din, :Dout].set(z.astype(f32))
    rp = jnp.zeros((1, Dout_p), f32).at[:, :Dout].set(bias.astype(f32).reshape(1, Dout))

    # z / bias column constants, computed once and packed into one (8, Dout_p) slab.
    z_norm = jnp.maximum(jnp.sqrt(jnp.sum(zp * zp, axis=0, keepdims=True)), BALL_EPS)
    two_cr = 2.0 * sqrt_c * rp
    col_ok = (jnp.arange(Dout_p) < Dout)[None, :]
    c1 = jnp.where(col_ok, sqrt_c * jnp.cosh(two_cr) / z_norm, 0.0)
    c2 = jnp.where(col_ok, jnp.sinh(two_cr), 0.0)
    c3 = jnp.where(col_ok, (2.0 / sqrt_c) * z_norm, 0.0)
    cpack = jnp.zeros((8, Dout_p), f32)
    cpack = cpack.at[0:1].set(c1).at[1:2].set(c2).at[2:3].set(c3)

    kernel = functools.partial(poincare_linear_kernel, c=c)
    grid = (Bp // block_b,)

    vmem_limit = int(min(cap, max(vmem_need(block_b) + 16 * 1024 * 1024, 32 * 1024 * 1024)))

    cost = pl.CostEstimate(
        flops=2 * Bp * Din_p * Dout_p,
        transcendentals=6 * Bp * Dout_p,
        bytes_accessed=itm * (Bp * Din_p + Bp * Dout_p) + 4 * Din_p * Dout_p,
    )

    out = pl.pallas_call(
        kernel,
        out_shape=jax.ShapeDtypeStruct((Bp, Dout_p), x.dtype),
        grid_spec=pltpu.PrefetchScalarGridSpec(
            num_scalar_prefetch=0,
            grid=grid,
            in_specs=[
                # x: streamed per batch tile (double-buffered by default)
                pl.BlockSpec((block_b, Din_p), lambda i: (i, 0)),
                # z: resident constant -> single buffer (no wasted double-buffer VMEM)
                pl.BlockSpec((Din_p, Dout_p), lambda i: (0, 0),
                             pipeline_mode=pl.Buffered(1)),
                # packed c1/c2/c3 constants: one DMA, one buffer
                pl.BlockSpec((8, Dout_p), lambda i: (0, 0),
                             pipeline_mode=pl.Buffered(1)),
            ],
            out_specs=pl.BlockSpec((block_b, Dout_p), lambda i: (i, 0)),
        ),
        compiler_params=pltpu.CompilerParams(
            dimension_semantics=("parallel",),
            vmem_limit_bytes=vmem_limit,
        ),
        cost_estimate=cost,
    )(xp, zp, cpack)

    if (Bp, Dout_p) == (B, Dout):
        return out
    return out[:B, :Dout]


if __name__ == "__main__":
    key = jax.random.PRNGKey(0)
    k1, k2, k3, k4 = jax.random.split(key, 4)
    Din, Dout = 32, 32

    # Case 1: PoincareLinear.reset_parameters with id_init=True, bias=True (zero bias).
    B = 8
    z_id = 0.5 * jnp.eye(Din, Dout, dtype=jnp.float32)
    bias0 = jnp.zeros((Dout,), dtype=jnp.float32)
    x = 0.2 * jax.random.normal(k1, (B, Din), dtype=jnp.float32)

    out = jax.block_until_ready(poincare_linear(x, z_id, bias0))
    ref = _poincare_linear_reference(x, z_id, bias0.reshape(1, Dout), CURVATURE)
    assert out.shape == (B, Dout)
    assert bool(jnp.all(jnp.isfinite(out)))
    assert bool(jnp.allclose(out, ref, atol=2e-4, rtol=2e-3))

    # Case 2: random weights (id_init=False), non-zero bias, non-aligned batch
    # (exercises batch padding + the 2-tile grid path).
    B2 = 20
    z_rnd = (2 * Din * Dout) ** (-0.5) * jax.random.normal(k2, (Din, Dout), jnp.float32)
    bias_rnd = 0.1 * jax.random.normal(k3, (Dout,), jnp.float32)
    x2 = 0.2 * jax.random.normal(k4, (B2, Din), dtype=jnp.float32)

    out2 = jax.block_until_ready(poincare_linear(x2, z_rnd, bias_rnd))
    ref2 = _poincare_linear_reference(x2, z_rnd, bias_rnd.reshape(1, Dout), CURVATURE)
    assert out2.shape == (B2, Dout)
    assert bool(jnp.all(jnp.isfinite(out2)))
    assert bool(jnp.allclose(out2, ref2, atol=2e-4, rtol=2e-3))

    print("KERNEL_OK")
</pallas_src>

<mosaic_0001>
module attributes {stable_mosaic.version = 11 : i64} {
  func.func @poincare_linear_kernel(%arg0: i32, %arg1: memref<8x128xf32, #tpu.memory_space<vmem>>, %arg2: memref<128x128xf32, #tpu.memory_space<vmem>>, %arg3: memref<8x128xf32, #tpu.memory_space<vmem>>, %arg4: memref<8x128xf32, #tpu.memory_space<vmem>>) attributes {dimension_semantics = [#tpu.dimension_semantics<parallel>], iteration_bounds = array<i64: 1>, scalar_prefetch = 0 : i64, scratch_operands = 0 : i64, tpu.core_type = #tpu.core_type<tc>, window_params = [{transform_indices = @transform_0, window_bounds = array<i64: 8, 128>}, {pipeline_mode = #tpu.pipeline_mode<synchronous>, transform_indices = @transform_1, window_bounds = array<i64: 128, 128>}, {pipeline_mode = #tpu.pipeline_mode<synchronous>, transform_indices = @transform_2, window_bounds = array<i64: 8, 128>}, {transform_indices = @transform_3, window_bounds = array<i64: 8, 128>}]} {
    %c0 = arith.constant 0 : index
    %c0_0 = arith.constant 0 : index
    %0 = vector.load %arg1[%c0, %c0_0] : memref<8x128xf32, #tpu.memory_space<vmem>>, vector<8x128xf32>
    %c0_1 = arith.constant 0 : index
    %c0_2 = arith.constant 0 : index
    %1 = vector.load %arg2[%c0_1, %c0_2] : memref<128x128xf32, #tpu.memory_space<vmem>>, vector<128x128xf32>
    %c0_3 = arith.constant 0 : index
    %c0_4 = arith.constant 0 : index
    %2 = vector.load %arg3[%c0_3, %c0_4] : memref<8x128xf32, #tpu.memory_space<vmem>>, vector<1x128xf32>
    %c1 = arith.constant 1 : index
    %c0_5 = arith.constant 0 : index
    %3 = vector.load %arg3[%c1, %c0_5] : memref<8x128xf32, #tpu.memory_space<vmem>>, vector<1x128xf32>
    %c2 = arith.constant 2 : index
    %c0_6 = arith.constant 0 : index
    %4 = vector.load %arg3[%c2, %c0_6] : memref<8x128xf32, #tpu.memory_space<vmem>>, vector<1x128xf32>
    %5 = arith.mulf %0, %0 : vector<8x128xf32>
    %cst = arith.constant dense<0.000000e+00> : vector<8xf32>
    %6 = vector.multi_reduction <add>, %5, %cst [1] : vector<8x128xf32> to vector<8xf32>
    %7 = vector.shape_cast %6 : vector<8xf32> to vector<8x1xf32>
    %cst_7 = arith.constant 1.000000e-30 : f32
    %8 = vector.broadcast %cst_7 : f32 to vector<8x1xf32>
    %9 = arith.maximumf %7, %8 : vector<8x1xf32>
    %10 = math.rsqrt %9 : vector<8x1xf32>
    %11 = arith.mulf %9, %10 : vector<8x1xf32>
    %cst_8 = arith.constant 1.000000e+00 : f32
    %12 = vector.broadcast %cst_8 : f32 to vector<8x1xf32>
    %13 = arith.mulf %12, %11 : vector<8x1xf32>
    %14 = math.tanh %13 : vector<8x1xf32>
    %15 = arith.mulf %14, %10 : vector<8x1xf32>
    %cst_9 = arith.constant 1.000000e+00 : f32
    %16 = vector.broadcast %cst_9 : f32 to vector<8x1xf32>
    %17 = arith.mulf %15, %16 : vector<8x1xf32>
    %18 = arith.mulf %14, %14 : vector<8x1xf32>
    %cst_10 = arith.constant 1.000000e+00 : f32
    %19 = vector.broadcast %cst_10 : f32 to vector<8x1xf32>
    %20 = arith.subf %19, %18 : vector<8x1xf32>
    %cst_11 = arith.constant 1.000000e-15 : f32
    %21 = vector.broadcast %cst_11 : f32 to vector<8x1xf32>
    %22 = arith.maximumf %20, %21 : vector<8x1xf32>
    %cst_12 = arith.constant 2.000000e+00 : f32
    %23 = vector.broadcast %cst_12 : f32 to vector<8x1xf32>
    %24 = arith.divf %23, %22 : vector<8x1xf32>
    %25 = arith.mulf %24, %17 : vector<8x1xf32>
    %cst_13 = arith.constant dense<0.000000e+00> : vector<8x128xf32>
    %26 = tpu.matmul %0, %1, %cst_13 {dimension_numbers = #tpu.dot_dimension_numbers<[1], [0], [0], [1], [0, 0, 1, 1], [], []>, precision = #tpu.contract_precision<fp32>} : vector<8x128xf32>, vector<128x128xf32>, vector<8x128xf32> -> vector<8x128xf32>
    %27 = vector.broadcast %25 : vector<8x1xf32> to vector<8x128xf32>
    %28 = arith.mulf %27, %26 : vector<8x128xf32>
    %29 = vector.broadcast %2 : vector<1x128xf32> to vector<8x128xf32>
    %30 = arith.mulf %28, %29 : vector<8x128xf32>
    %cst_14 = arith.constant 1.000000e+00 : f32
    %31 = vector.broadcast %cst_14 : f32 to vector<8x1xf32>
    %32 = arith.subf %24, %31 : vector<8x1xf32>
    %33 = vector.broadcast %32 : vector<8x1xf32> to vector<8x128xf32>
    %34 = vector.broadcast %3 : vector<1x128xf32> to vector<8x128xf32>
    %35 = arith.mulf %33, %34 : vector<8x128xf32>
    %36 = arith.subf %30, %35 : vector<8x128xf32>
    %37 = math.absf %36 : vector<8x128xf32>
    %38 = arith.mulf %37, %37 : vector<8x128xf32>
    %cst_15 = arith.constant 1.000000e+00 : f32
    %39 = vector.broadcast %cst_15 : f32 to vector<8x128xf32>
    %40 = arith.addf %38, %39 : vector<8x128xf32>
    %41 = math.sqrt %40 : vector<8x128xf32>
    %42 = arith.addf %37, %41 : vector<8x128xf32>
    %43 = math.log %42 : vector<8x128xf32>
    %cst_16 = arith.constant 0.000000e+00 : f32
    %44 = vector.broadcast %cst_16 : f32 to vector<8x128xf32>
    %45 = arith.cmpf olt, %36, %44 : vector<8x128xf32>
    %cst_17 = arith.constant 0.000000e+00 : f32
    %46 = vector.broadcast %cst_17 : f32 to vector<8x128xf32>
    %47 = arith.subf %46, %43 : vector<8x128xf32>
    %48 = arith.select %45, %47, %43 : vector<8x128xi1>, vector<8x128xf32>
    %49 = vector.broadcast %4 : vector<1x128xf32> to vector<8x128xf32>
    %50 = arith.mulf %49, %48 : vector<8x128xf32>
    %cst_18 = arith.constant 1.000000e+00 : f32
    %51 = vector.broadcast %cst_18 : f32 to vector<8x128xf32>
    %52 = arith.mulf %51, %50 : vector<8x128xf32>
    %53 = math.exp %52 : vector<8x128xf32>
    %cst_19 = arith.constant 1.000000e+00 : f32
    %54 = vector.broadcast %cst_19 : f32 to vector<8x128xf32>
    %55 = arith.divf %54, %53 : vector<8x128xf32>
    %56 = arith.subf %53, %55 : vector<8x128xf32>
    %cst_20 = arith.constant 5.000000e-01 : f32
    %57 = vector.broadcast %cst_20 : f32 to vector<8x128xf32>
    %58 = arith.mulf %57, %56 : vector<8x128xf32>
    %59 = arith.mulf %58, %58 : vector<8x128xf32>
    %cst_21 = arith.constant dense<0.000000e+00> : vector<8xf32>
    %60 = vector.multi_reduction <add>, %59, %cst_21 [1] : vector<8x128xf32> to vector<8xf32>
    %61 = vector.shape_cast %60 : vector<8xf32> to vector<8x1xf32>
    %cst_22 = arith.constant 1.000000e+00 : f32
    %62 = vector.broadcast %cst_22 : f32 to vector<8x1xf32>
    %63 = arith.mulf %62, %61 : vector<8x1xf32>
    %cst_23 = arith.constant 1.000000e+00 : f32
    %64 = vector.broadcast %cst_23 : f32 to vector<8x1xf32>
    %65 = arith.addf %64, %63 : vector<8x1xf32>
    %66 = math.sqrt %65 : vector<8x1xf32>
    %cst_24 = arith.constant 1.000000e+00 : f32
    %67 = vector.broadcast %cst_24 : f32 to vector<8x1xf32>
    %68 = arith.addf %67, %66 : vector<8x1xf32>
    %cst_25 = arith.constant 1.000000e+00 : f32
    %69 = vector.broadcast %cst_25 : f32 to vector<8x1xf32>
    %70 = arith.divf %69, %68 : vector<8x1xf32>
    %71 = math.sqrt %61 : vector<8x1xf32>
    %72 = arith.mulf %71, %70 : vector<8x1xf32>
    %cst_26 = arith.constant 1.000000e-15 : f32
    %73 = vector.broadcast %cst_26 : f32 to vector<8x1xf32>
    %74 = arith.maximumf %72, %73 : vector<8x1xf32>
    %cst_27 = arith.constant 0.995999991 : f32
    %75 = vector.broadcast %cst_27 : f32 to vector<8x1xf32>
    %76 = arith.divf %75, %74 : vector<8x1xf32>
    %cst_28 = arith.constant 1.000000e+00 : f32
    %77 = vector.broadcast %cst_28 : f32 to vector<8x1xf32>
    %78 = arith.minimumf %76, %77 : vector<8x1xf32>
    %79 = arith.mulf %74, %78 : vector<8x1xf32>
    %cst_29 = arith.constant 1.000000e+00 : f32
    %80 = vector.broadcast %cst_29 : f32 to vector<8x1xf32>
    %81 = arith.mulf %80, %79 : vector<8x1xf32>
    %cst_30 = arith.constant 1.000000e+00 : f32
    %82 = vector.broadcast %cst_30 : f32 to vector<8x1xf32>
    %83 = arith.addf %82, %81 : vector<8x1xf32>
    %cst_31 = arith.constant 1.000000e+00 : f32
    %84 = vector.broadcast %cst_31 : f32 to vector<8x1xf32>
    %85 = arith.subf %84, %81 : vector<8x1xf32>
    %86 = arith.divf %83, %85 : vector<8x1xf32>
    %87 = math.log %86 : vector<8x1xf32>
    %cst_32 = arith.constant 5.000000e-01 : f32
    %88 = vector.broadcast %cst_32 : f32 to vector<8x1xf32>
    %89 = arith.mulf %88, %87 : vector<8x1xf32>
    %90 = arith.divf %89, %81 : vector<8x1xf32>
    %91 = arith.mulf %70, %78 : vector<8x1xf32>
    %92 = arith.mulf %91, %90 : vector<8x1xf32>
    %93 = vector.broadcast %92 : vector<8x1xf32> to vector<8x128xf32>
    %94 = arith.mulf %58, %93 : vector<8x128xf32>
    %c0_33 = arith.constant 0 : index
    %c0_34 = arith.constant 0 : index
    %95 = vector.load %arg4[%c0_33, %c0_34] : memref<8x128xf32, #tpu.memory_space<vmem>>, vector<8x128xf32>
    tpu.vector_store %arg4[%c0_33, %c0_34], %94 {strides = array<i32>} : memref<8x128xf32, #tpu.memory_space<vmem>>, vector<8x128xf32>,
    return
  }
  func.func @transform_0(%arg0: i32) -> (i32, i32) {
    %c0_i32 = arith.constant 0 : i32
    %c0_i32_0 = arith.constant 0 : i32
    return %arg0, %c0_i32 : i32, i32
  }
  func.func @transform_1(%arg0: i32) -> (i32, i32) {
    %c0_i32 = arith.constant 0 : i32
    %c0_i32_0 = arith.constant 0 : i32
    %c0_i32_1 = arith.constant 0 : i32
    return %c0_i32, %c0_i32_0 : i32, i32
  }
  func.func @transform_2(%arg0: i32) -> (i32, i32) {
    %c0_i32 = arith.constant 0 : i32
    %c0_i32_0 = arith.constant 0 : i32
    %c0_i32_1 = arith.constant 0 : i32
    return %c0_i32, %c0_i32_0 : i32, i32
  }
  func.func @transform_3(%arg0: i32) -> (i32, i32) {
    %c0_i32 = arith.constant 0 : i32
    %c0_i32_0 = arith.constant 0 : i32
    return %arg0, %c0_i32 : i32, i32
  }
}

</mosaic_0001>

<llo_original>
// kernel: tpu_custom_call.1
$region0: #{tpu_custom_call.1}
  #allocation0 [shape = 'u32[]', space=smem, size = 0x4, offset = 0x4, fixed_abs, tag = 'smem constant byte address 0x4 - core index']
  #allocation1 [shape = 'u32[144,128]{1,0:T(1,128)}', space=vmem, size = 0x12000, scoped, tag = 'internal scratch']
  %s0 = inlined_call_operand.hbm [shape: f32[8,128], index: 0, kind: input, shape index: {}]
  %s1 = inlined_call_operand.hbm [shape: f32[128,128], index: 1, kind: input, shape index: {}]
  %s2 = inlined_call_operand.hbm [shape: f32[8,128], index: 2, kind: input, shape index: {}]
  %s3 = inlined_call_operand.hbm [shape: f32[8,128], index: 3, kind: output, shape index: {}]
  %s4 = sld [smem:[#allocation0]]
  $region34: #{tpu_custom_call.1} parent=0
    _
  %s6 = ssub.s32 1, %s4
  %s7 = scalar_select 0, %s6, %s4
  $region1: #{tpu_custom_call.1} parent=0
    #allocation2 [shape = 'u8[4096]{0}', space=vmem, size = 0x1000, scoped, tag = 'input window, operand 0, single buffered']
    #allocation3 [shape = 's32[1]{0}', space=sflag, size = 0x4, scoped, tag = 'scoped memory for tpu_custom_call.1']
    #allocation4 [shape = 's32[1]{0}', space=sflag, size = 0x4, scoped, tag = 'scoped memory for tpu_custom_call.1']
    #allocation5 [shape = 'u8[65536]{0}', space=vmem, size = 0x10000, scoped, tag = 'input window, operand 1, single buffered']
    #allocation6 [shape = 's32[1]{0}', space=sflag, size = 0x4, scoped, tag = 'scoped memory for tpu_custom_call.1']
    #allocation7 [shape = 'u8[4096]{0}', space=vmem, size = 0x1000, scoped, tag = 'input window, operand 2, single buffered']
    #allocation8 [shape = 'u8[4096]{0}', space=vmem, size = 0x1000, scoped, tag = 'output window, operand 0, single buffered']
    %8 = vsyncpa [#allocation3], 0
    %9 = vsyncpa [#allocation6], 0
    %10 = vsyncpa [#allocation4], 0
    // Predicated region
    $region2: #{tpu_custom_call.1} parent=1 // pred_check
      _
    $region3: #{tpu_custom_call.1} parent=1 // pred_check_branch
      %12 = sbr.rel (0) target = $region5
    $region4: #{tpu_custom_call.1} parent=1 // pred_region
      %s14 = ssub.s32 128, 128
      %15 = vsyncadd [#allocation3], %s14
      %s17 = sshll.u32 [#allocation2], 4
      %s18 = int_to_ptr.vmem [resolvable:$true] %s17
      %20 = dma.hbm_to_vmem [thread:$0]  %s0, 128, %s18, [#allocation3]
    $region5: #{tpu_custom_call.1} parent=1 // pred_fallthru
      _
    // Predicated region
    $region6: #{tpu_custom_call.1} parent=1 // pred_check
      _
    $region7: #{tpu_custom_call.1} parent=1 // pred_check_branch
      %22 = sbr.rel (0) target = $region9
    $region8: #{tpu_custom_call.1} parent=1 // pred_region
      %s24 = ssub.s32 2048, 2048
      %25 = vsyncadd [#allocation6], %s24
      %s26 = sshll.u32 [#allocation5], 4
      %s27 = int_to_ptr.vmem [resolvable:$true] %s26
      %32 = dma.hbm_to_vmem [thread:$0]  %s1, 2048, %s27, [#allocation6], 128, 128, 8
    $region9: #{tpu_custom_call.1} parent=1 // pred_fallthru
      _
    // Predicated region
    $region10: #{tpu_custom_call.1} parent=1 // pred_check
      _
    $region11: #{tpu_custom_call.1} parent=1 // pred_check_branch
      %34 = sbr.rel (0) target = $region13
    $region12: #{tpu_custom_call.1} parent=1 // pred_region
      %s36 = ssub.s32 128, 128
      %37 = vsyncadd [#allocation6], %s36
      %s39 = sshll.u32 [#allocation7], 4
      %s40 = int_to_ptr.vmem [resolvable:$true] %s39
      %42 = dma.hbm_to_vmem [thread:$0]  %s2, 128, %s40, [#allocation6]
    $region13: #{tpu_custom_call.1} parent=1 // pred_fallthru
      _
    // Predicated region
    $region14: #{tpu_custom_call.1} parent=1 // pred_check
      _
    $region15: #{tpu_custom_call.1} parent=1 // pred_check_branch
      %44 = sbr.rel (0) target = $region17
    $region16: #{tpu_custom_call.1} parent=1 // pred_region
      %45 = dma.done [#allocation3], 128
    $region17: #{tpu_custom_call.1} parent=1 // pred_fallthru
      _
    // Predicated region
    $region18: #{tpu_custom_call.1} parent=1 // pred_check
      _
    $region19: #{tpu_custom_call.1} parent=1 // pred_check_branch
      %47 = sbr.rel (0) target = $region21
    $region20: #{tpu_custom_call.1} parent=1 // pred_region
      %48 = dma.done [#allocation6], 2048
    $region21: #{tpu_custom_call.1} parent=1 // pred_fallthru
      _
    // Predicated region
    $region22: #{tpu_custom_call.1} parent=1 // pred_check
      _
    $region23: #{tpu_custom_call.1} parent=1 // pred_check_branch
      %50 = sbr.rel (0) target = $region25
    $region24: #{tpu_custom_call.1} parent=1 // pred_region
      %51 = dma.done [#allocation6], 128
    $region25: #{tpu_custom_call.1} parent=1 // pred_fallthru
      _
    %v52 = vld [vmem:[#allocation2] sm:$0xff]
    %v53 = vld [vmem:[#allocation5] sm:$0xff]
    %v54 = vld [vmem:[#allocation5 + $0x8] sm:$0xff]
    %v55 = vld [vmem:[#allocation5 + $0x10] sm:$0xff]
    %v56 = vld [vmem:[#allocation5 + $0x18] sm:$0xff]
    %v57 = vld [vmem:[#allocation5 + $0x20] sm:$0xff]
    %v58 = vld [vmem:[#allocation5 + $0x28] sm:$0xff]
    %v59 = vld [vmem:[#allocation5 + $0x30] sm:$0xff]
    %v60 = vld [vmem:[#allocation5 + $0x38] sm:$0xff]
    %v61 = vld [vmem:[#allocation5 + $0x40] sm:$0xff]
    %v62 = vld [vmem:[#allocation5 + $0x48] sm:$0xff]
    %v63 = vld [vmem:[#allocation5 + $0x50] sm:$0xff]
    %v64 = vld [vmem:[#allocation5 + $0x58] sm:$0xff]
    %v65 = vld [vmem:[#allocation5 + $0x60] sm:$0xff]
    %v66 = vld [vmem:[#allocation5 + $0x68] sm:$0xff]
    %v67 = vld [vmem:[#allocation5 + $0x70] sm:$0xff]
    %v68 = vld [vmem:[#allocation5 + $0x78] sm:$0xff]
    %v69 = vld [vmem:[#allocation7] sm:$0x1]
    %v70 = vld [vmem:[#allocation7 + $0x1] sm:$0x1]
    %v71 = vld [vmem:[#allocation7 + $0x2] sm:$0x1]
    %v72 = vmul.f32 %v52, %v52
    %73 = vadd.xlane.f32.xlu0 %v72
    %v74 = vpop.xlane.xlu0 %73
    %v75 = vmax.f32 %v74, 1e-30
    %v76 = vrsqrt.pop %v75
    %v77 = vmul.f32 %v75, %v76
    %v78 = vtanh.pop %v77
    %v79 = vmul.f32 %v78, %v76
    %v80 = vmul.f32 %v78, %v78
    %v81 = vsub.f32 1.0, %v80
    %v82 = vmax.f32 %v81, 1e-15
    %v83 = vrcp.pop %v82
    %v84 = vmul.f32 2.0, %v83
    %v85 = vmul.f32 %v84, %v79
    %86 = vmatprep.subr.mxu0 0.0
    %v87 = vand.u32 %v53, 4294901760
    %88 = vmatpush1.msra.mxu0 %v87
    %89 = vmatprep.subr.mxu0 0.0
    %v90 = vand.u32 %v54, 4294901760
    %91 = vmatpush1.msra.mxu0 %v90
    %92 = vmatprep.subr.mxu0 0.0
    %v93 = vand.u32 %v55, 4294901760
    %94 = vmatpush1.msra.mxu0 %v93
    %95 = vmatprep.subr.mxu0 0.0
    %v96 = vand.u32 %v56, 4294901760
    %97 = vmatpush1.msra.mxu0 %v96
    %98 = vmatprep.subr.mxu0 0.0
    %v99 = vand.u32 %v57, 4294901760
    %100 = vmatpush1.msra.mxu0 %v99
    %101 = vmatprep.subr.mxu0 0.0
    %v102 = vand.u32 %v58, 4294901760
    %103 = vmatpush1.msra.mxu0 %v102
    %104 = vmatprep.subr.mxu0 0.0
    %v105 = vand.u32 %v59, 4294901760
    %106 = vmatpush1.msra.mxu0 %v105
    %107 = vmatprep.subr.mxu0 0.0
    %v108 = vand.u32 %v60, 4294901760
    %109 = vmatpush1.msra.mxu0 %v108
    %110 = vmatprep.subr.mxu0 0.0
    %v111 = vand.u32 %v61, 4294901760
    %112 = vmatpush1.msra.mxu0 %v111
    %113 = vmatprep.subr.mxu0 0.0
    %v114 = vand.u32 %v62, 4294901760
    %115 = vmatpush1.msra.mxu0 %v114
    %116 = vmatprep.subr.mxu0 0.0
    %v117 = vand.u32 %v63, 4294901760
    %118 = vmatpush1.msra.mxu0 %v117
    %119 = vmatprep.subr.mxu0 0.0
    %v120 = vand.u32 %v64, 4294901760
    %121 = vmatpush1.msra.mxu0 %v120
    %122 = vmatprep.subr.mxu0 0.0
    %v123 = vand.u32 %v65, 4294901760
    %124 = vmatpush1.msra.mxu0 %v123
    %125 = vmatprep.subr.mxu0 0.0
    %v126 = vand.u32 %v66, 4294901760
    %127 = vmatpush1.msra.mxu0 %v126
    %128 = vmatprep.subr.mxu0 0.0
    %v129 = vand.u32 %v67, 4294901760
    %130 = vmatpush1.msra.mxu0 %v129
    %131 = vmatprep.subr.mxu0 0.0
    %v132 = vand.u32 %v68, 4294901760
    %133 = vmatpush1.msra.mxu0 %v132
    %134 = vmatprep.subr.mxu0 0.0
    %135 = vmatpush1.msra.mxu0 0.0
    %136 = vmatprep.subr.mxu0 0.0
    %137 = vmatpush1.msra.mxu0 0.0
    %138 = vmatprep.subr.mxu0 0.0
    %139 = vmatpush1.msra.mxu0 0.0
    %140 = vmatprep.subr.mxu0 0.0
    %141 = vmatpush1.msra.mxu0 0.0
    %142 = vmatprep.subr.mxu0 0.0
    %143 = vmatpush1.msra.mxu0 0.0
    %144 = vmatprep.subr.mxu0 0.0
    %145 = vmatpush1.msra.mxu0 0.0
    %146 = vmatprep.subr.mxu0 0.0
    %147 = vmatpush1.msra.mxu0 0.0
    %148 = vmatprep.subr.mxu0 0.0
    %149 = vmatpush1.msra.mxu0 0.0
    %150 = vmatprep.subr.mxu0 0.0
    %151 = vmatpush1.msra.mxu0 0.0
    %152 = vmatprep.subr.mxu0 0.0
    %153 = vmatpush1.msra.mxu0 0.0
    %154 = vmatprep.subr.mxu0 0.0
    %155 = vmatpush1.msra.mxu0 0.0
    %156 = vmatprep.subr.mxu0 0.0
    %157 = vmatpush1.msra.mxu0 0.0
    %158 = vmatprep.subr.mxu0 0.0
    %159 = vmatpush1.msra.mxu0 0.0
    %160 = vmatprep.subr.mxu0 0.0
    %161 = vmatpush1.msra.mxu0 0.0
    %162 = vmatprep.subr.mxu0 0.0
    %163 = vmatpush1.msra.mxu0 0.0
    %164 = vmatprep.subr.mxu0 0.0
    %165 = vmatpush1.msra.mxu0 0.0
    %166 = vmatprep.mubr.f32.mxu0 0.0
    %v167 = vand.u32 %v52, 4294901760
    %v168 = vsub.f32 %v52, %v167
    %v169 = vand.u32 %v168, 4294901760
    %v170 = vsub.f32 %v168, %v169
    %v171 = vand.u32 %v170, 4294901760
    %172 = vmatmul.mubr.f32.gmra.mrb[0].mxu0 %v171
    %v173 = vpop.f32.mrb[0].mxu0
    %v174 = vadd.f32 0.0, %v173
    %v175 = vpop.f32.mrb[0].mxu0
    %176 = vdwg.mxu0
    %177 = vmatprep.subr.mxu0 0.0
    %v178 = vand.u32 %v53, 4294901760
    %v179 = vsub.f32 %v53, %v178
    %v180 = vand.u32 %v179, 4294901760
    %v181 = vsub.f32 %v179, %v180
    %v182 = vand.u32 %v181, 4294901760
    %183 = vmatpush1.msra.mxu0 %v182
    %184 = vmatprep.subr.mxu0 0.0
    %v185 = vand.u32 %v54, 4294901760
    %v186 = vsub.f32 %v54, %v185
    %v187 = vand.u32 %v186, 4294901760
    %v188 = vsub.f32 %v186, %v187
    %v189 = vand.u32 %v188, 4294901760
    %190 = vmatpush1.msra.mxu0 %v189
    %191 = vmatprep.subr.mxu0 0.0
    %v192 = vand.u32 %v55, 4294901760
    %v193 = vsub.f32 %v55, %v192
    %v194 = vand.u32 %v193, 4294901760
    %v195 = vsub.f32 %v193, %v194
    %v196 = vand.u32 %v195, 4294901760
    %197 = vmatpush1.msra.mxu0 %v196
    %198 = vmatprep.subr.mxu0 0.0
    %v199 = vand.u32 %v56, 4294901760
    %v200 = vsub.f32 %v56, %v199
    %v201 = vand.u32 %v200, 4294901760
    %v202 = vsub.f32 %v200, %v201
    %v203 = vand.u32 %v202, 4294901760
    %204 = vmatpush1.msra.mxu0 %v203
    %205 = vmatprep.subr.mxu0 0.0
    %v206 = vand.u32 %v57, 4294901760
    %v207 = vsub.f32 %v57, %v206
    %v208 = vand.u32 %v207, 4294901760
    %v209 = vsub.f32 %v207, %v208
    %v210 = vand.u32 %v209, 4294901760
    %211 = vmatpush1.msra.mxu0 %v210
    %212 = vmatprep.subr.mxu0 0.0
    %v213 = vand.u32 %v58, 4294901760
    %v214 = vsub.f32 %v58, %v213
    %v215 = vand.u32 %v214, 4294901760
    %v216 = vsub.f32 %v214, %v215
    %v217 = vand.u32 %v216, 4294901760
    %218 = vmatpush1.msra.mxu0 %v217
    %219 = vmatprep.subr.mxu0 0.0
    %v220 = vand.u32 %v59, 4294901760
    %v221 = vsub.f32 %v59, %v220
    %v222 = vand.u32 %v221, 4294901760
    %v223 = vsub.f32 %v221, %v222
    %v224 = vand.u32 %v223, 4294901760
    %225 = vmatpush1.msra.mxu0 %v224
    %226 = vmatprep.subr.mxu0 0.0
    %v227 = vand.u32 %v60, 4294901760
    %v228 = vsub.f32 %v60, %v227
    %v229 = vand.u32 %v228, 4294901760
    %v230 = vsub.f32 %v228, %v229
    %v231 = vand.u32 %v230, 4294901760
    %232 = vmatpush1.msra.mxu0 %v231
    %233 = vmatprep.subr.mxu0 0.0
    %v234 = vand.u32 %v61, 4294901760
    %v235 = vsub.f32 %v61, %v234
    %v236 = vand.u32 %v235, 4294901760
    %v237 = vsub.f32 %v235, %v236
    %v238 = vand.u32 %v237, 4294901760
    %239 = vmatpush1.msra.mxu0 %v238
    %240 = vmatprep.subr.mxu0 0.0
    %v241 = vand.u32 %v62, 4294901760
    %v242 = vsub.f32 %v62, %v241
    %v243 = vand.u32 %v242, 4294901760
    %v244 = vsub.f32 %v242, %v243
    %v245 = vand.u32 %v244, 4294901760
    %246 = vmatpush1.msra.mxu0 %v245
    %247 = vmatprep.subr.mxu0 0.0
    %v248 = vand.u32 %v63, 4294901760
    %v249 = vsub.f32 %v63, %v248
    %v250 = vand.u32 %v249, 4294901760
    %v251 = vsub.f32 %v249, %v250
    %v252 = vand.u32 %v251, 4294901760
    %253 = vmatpush1.msra.mxu0 %v252
    %254 = vmatprep.subr.mxu0 0.0
    %v255 = vand.u32 %v64, 4294901760
    %v256 = vsub.f32 %v64, %v255
    %v257 = vand.u32 %v256, 4294901760
    %v258 = vsub.f32 %v256, %v257
    %v259 = vand.u32 %v258, 4294901760
    %260 = vmatpush1.msra.mxu0 %v259
    %261 = vmatprep.subr.mxu0 0.0
    %v262 = vand.u32 %v65, 4294901760
    %v263 = vsub.f32 %v65, %v262
    %v264 = vand.u32 %v263, 4294901760
    %v265 = vsub.f32 %v263, %v264
    %v266 = vand.u32 %v265, 4294901760
    %267 = vmatpush1.msra.mxu0 %v266
    %268 = vmatprep.subr.mxu0 0.0
    %v269 = vand.u32 %v66, 4294901760
    %v270 = vsub.f32 %v66, %v269
    %v271 = vand.u32 %v270, 4294901760
    %v272 = vsub.f32 %v270, %v271
    %v273 = vand.u32 %v272, 4294901760
    %274 = vmatpush1.msra.mxu0 %v273
    %275 = vmatprep.subr.mxu0 0.0
    %v276 = vand.u32 %v67, 4294901760
    %v277 = vsub.f32 %v67, %v276
    %v278 = vand.u32 %v277, 4294901760
    %v279 = vsub.f32 %v277, %v278
    %v280 = vand.u32 %v279, 4294901760
    %281 = vmatpush1.msra.mxu0 %v280
    %282 = vmatprep.subr.mxu0 0.0
    %v283 = vand.u32 %v68, 4294901760
    %v284 = vsub.f32 %v68, %v283
    %v285 = vand.u32 %v284, 4294901760
    %v286 = vsub.f32 %v284, %v285
    %v287 = vand.u32 %v286, 4294901760
    %288 = vmatpush1.msra.mxu0 %v287
    %289 = vmatprep.subr.mxu0 0.0
    %290 = vmatpush1.msra.mxu0 0.0
    %291 = vmatprep.subr.mxu0 0.0
    %292 = vmatpush1.msra.mxu0 0.0
    %293 = vmatprep.subr.mxu0 0.0
    %294 = vmatpush1.msra.mxu0 0.0
    %295 = vmatprep.subr.mxu0 0.0
    %296 = vmatpush1.msra.mxu0 0.0
    %297 = vmatprep.subr.mxu0 0.0
    %298 = vmatpush1.msra.mxu0 0.0
    %299 = vmatprep.subr.mxu0 0.0
    %300 = vmatpush1.msra.mxu0 0.0
    %301 = vmatprep.subr.mxu0 0.0
    %302 = vmatpush1.msra.mxu0 0.0
    %303 = vmatprep.subr.mxu0 0.0
    %304 = vmatpush1.msra.mxu0 0.0
    %305 = vmatprep.subr.mxu0 0.0
    %306 = vmatpush1.msra.mxu0 0.0
    %307 = vmatprep.subr.mxu0 0.0
    %308 = vmatpush1.msra.mxu0 0.0
    %309 = vmatprep.subr.mxu0 0.0
    %310 = vmatpush1.msra.mxu0 0.0
    %311 = vmatprep.subr.mxu0 0.0
    %312 = vmatpush1.msra.mxu0 0.0
    %313 = vmatprep.subr.mxu0 0.0
    %314 = vmatpush1.msra.mxu0 0.0
    %315 = vmatprep.subr.mxu0 0.0
    %316 = vmatpush1.msra.mxu0 0.0
    %317 = vmatprep.subr.mxu0 0.0
    %318 = vmatpush1.msra.mxu0 0.0
    %319 = vmatprep.subr.mxu0 0.0
    %320 = vmatpush1.msra.mxu0 0.0
    %321 = vmatprep.mubr.f32.mxu0 0.0
    %v322 = vand.u32 %v52, 4294901760
    %323 = vmatmul.mubr.f32.gmra.mrb[0].mxu0 %v322
    %v324 = vpop.f32.mrb[0].mxu0
    %v325 = vadd.f32 %v174, %v324
    %v326 = vpop.f32.mrb[0].mxu0
    %327 = vdwg.mxu0
    %328 = vmatprep.subr.mxu0 0.0
    %v329 = vand.u32 %v53, 4294901760
    %v330 = vsub.f32 %v53, %v329
    %331 = vmatpush1.msra.mxu0 %v330
    %332 = vmatprep.subr.mxu0 0.0
    %v333 = vand.u32 %v54, 4294901760
    %v334 = vsub.f32 %v54, %v333
    %335 = vmatpush1.msra.mxu0 %v334
    %336 = vmatprep.subr.mxu0 0.0
    %v337 = vand.u32 %v55, 4294901760
    %v338 = vsub.f32 %v55, %v337
    %339 = vmatpush1.msra.mxu0 %v338
    %340 = vmatprep.subr.mxu0 0.0
    %v341 = vand.u32 %v56, 4294901760
    %v342 = vsub.f32 %v56, %v341
    %343 = vmatpush1.msra.mxu0 %v342
    %344 = vmatprep.subr.mxu0 0.0
    %v345 = vand.u32 %v57, 4294901760
    %v346 = vsub.f32 %v57, %v345
    %347 = vmatpush1.msra.mxu0 %v346
    %348 = vmatprep.subr.mxu0 0.0
    %v349 = vand.u32 %v58, 4294901760
    %v350 = vsub.f32 %v58, %v349
    %351 = vmatpush1.msra.mxu0 %v350
    %352 = vmatprep.subr.mxu0 0.0
    %v353 = vand.u32 %v59, 4294901760
    %v354 = vsub.f32 %v59, %v353
    %355 = vmatpush1.msra.mxu0 %v354
    %356 = vmatprep.subr.mxu0 0.0
    %v357 = vand.u32 %v60, 4294901760
    %v358 = vsub.f32 %v60, %v357
    %359 = vmatpush1.msra.mxu0 %v358
    %360 = vmatprep.subr.mxu0 0.0
    %v361 = vand.u32 %v61, 4294901760
    %v362 = vsub.f32 %v61, %v361
    %363 = vmatpush1.msra.mxu0 %v362
    %364 = vmatprep.subr.mxu0 0.0
    %v365 = vand.u32 %v62, 4294901760
    %v366 = vsub.f32 %v62, %v365
    %367 = vmatpush1.msra.mxu0 %v366
    %368 = vmatprep.subr.mxu0 0.0
    %v369 = vand.u32 %v63, 4294901760
    %v370 = vsub.f32 %v63, %v369
    %371 = vmatpush1.msra.mxu0 %v370
    %372 = vmatprep.subr.mxu0 0.0
    %v373 = vand.u32 %v64, 4294901760
    %v374 = vsub.f32 %v64, %v373
    %375 = vmatpush1.msra.mxu0 %v374
    %376 = vmatprep.subr.mxu0 0.0
    %v377 = vand.u32 %v65, 4294901760
    %v378 = vsub.f32 %v65, %v377
    %379 = vmatpush1.msra.mxu0 %v378
    %380 = vmatprep.subr.mxu0 0.0
    %v381 = vand.u32 %v66, 4294901760
    %v382 = vsub.f32 %v66, %v381
    %383 = vmatpush1.msra.mxu0 %v382
    %384 = vmatprep.subr.mxu0 0.0
    %v385 = vand.u32 %v67, 4294901760
    %v386 = vsub.f32 %v67, %v385
    %387 = vmatpush1.msra.mxu0 %v386
    %388 = vmatprep.subr.mxu0 0.0
    %v389 = vand.u32 %v68, 4294901760
    %v390 = vsub.f32 %v68, %v389
    %391 = vmatpush1.msra.mxu0 %v390
    %392 = vmatprep.subr.mxu0 0.0
    %393 = vmatpush1.msra.mxu0 0.0
    %394 = vmatprep.subr.mxu0 0.0
    %395 = vmatpush1.msra.mxu0 0.0
    %396 = vmatprep.subr.mxu0 0.0
    %397 = vmatpush1.msra.mxu0 0.0
    %398 = vmatprep.subr.mxu0 0.0
    %399 = vmatpush1.msra.mxu0 0.0
    %400 = vmatprep.subr.mxu0 0.0
    %401 = vmatpush1.msra.mxu0 0.0
    %402 = vmatprep.subr.mxu0 0.0
    %403 = vmatpush1.msra.mxu0 0.0
    %404 = vmatprep.subr.mxu0 0.0
    %405 = vmatpush1.msra.mxu0 0.0
    %406 = vmatprep.subr.mxu0 0.0
    %407 = vmatpush1.msra.mxu0 0.0
    %408 = vmatprep.subr.mxu0 0.0
    %409 = vmatpush1.msra.mxu0 0.0
    %410 = vmatprep.subr.mxu0 0.0
    %411 = vmatpush1.msra.mxu0 0.0
    %412 = vmatprep.subr.mxu0 0.0
    %413 = vmatpush1.msra.mxu0 0.0
    %414 = vmatprep.subr.mxu0 0.0
    %415 = vmatpush1.msra.mxu0 0.0
    %416 = vmatprep.subr.mxu0 0.0
    %417 = vmatpush1.msra.mxu0 0.0
    %418 = vmatprep.subr.mxu0 0.0
    %419 = vmatpush1.msra.mxu0 0.0
    %420 = vmatprep.subr.mxu0 0.0
    %421 = vmatpush1.msra.mxu0 0.0
    %422 = vmatprep.subr.mxu0 0.0
    %423 = vmatpush1.msra.mxu0 0.0
    %424 = vmatprep.mubr.f32.mxu0 0.0
    %v425 = vand.u32 %v52, 4294901760
    %v426 = vsub.f32 %v52, %v425
    %427 = vmatmul.mubr.f32.gmra.mrb[0].mxu0 %v426
    %v428 = vpop.f32.mrb[0].mxu0
    %v429 = vadd.f32 %v325, %v428
    %v430 = vpop.f32.mrb[0].mxu0
    %431 = vdwg.mxu0
    %432 = vmatprep.subr.mxu0 0.0
    %v433 = vand.u32 %v53, 4294901760
    %434 = vmatpush1.msra.mxu0 %v433
    %435 = vmatprep.subr.mxu0 0.0
    %v436 = vand.u32 %v54, 4294901760
    %437 = vmatpush1.msra.mxu0 %v436
    %438 = vmatprep.subr.mxu0 0.0
    %v439 = vand.u32 %v55, 4294901760
    %440 = vmatpush1.msra.mxu0 %v439
    %441 = vmatprep.subr.mxu0 0.0
    %v442 = vand.u32 %v56, 4294901760
    %443 = vmatpush1.msra.mxu0 %v442
    %444 = vmatprep.subr.mxu0 0.0
    %v445 = vand.u32 %v57, 4294901760
    %446 = vmatpush1.msra.mxu0 %v445
    %447 = vmatprep.subr.mxu0 0.0
    %v448 = vand.u32 %v58, 4294901760
    %449 = vmatpush1.msra.mxu0 %v448
    %450 = vmatprep.subr.mxu0 0.0
    %v451 = vand.u32 %v59, 4294901760
    %452 = vmatpush1.msra.mxu0 %v451
    %453 = vmatprep.subr.mxu0 0.0
    %v454 = vand.u32 %v60, 4294901760
    %455 = vmatpush1.msra.mxu0 %v454
    %456 = vmatprep.subr.mxu0 0.0
    %v457 = vand.u32 %v61, 4294901760
    %458 = vmatpush1.msra.mxu0 %v457
    %459 = vmatprep.subr.mxu0 0.0
    %v460 = vand.u32 %v62, 4294901760
    %461 = vmatpush1.msra.mxu0 %v460
    %462 = vmatprep.subr.mxu0 0.0
    %v463 = vand.u32 %v63, 4294901760
    %464 = vmatpush1.msra.mxu0 %v463
    %465 = vmatprep.subr.mxu0 0.0
    %v466 = vand.u32 %v64, 4294901760
    %467 = vmatpush1.msra.mxu0 %v466
    %468 = vmatprep.subr.mxu0 0.0
    %v469 = vand.u32 %v65, 4294901760
    %470 = vmatpush1.msra.mxu0 %v469
    %471 = vmatprep.subr.mxu0 0.0
    %v472 = vand.u32 %v66, 4294901760
    %473 = vmatpush1.msra.mxu0 %v472
    %474 = vmatprep.subr.mxu0 0.0
    %v475 = vand.u32 %v67, 4294901760
    %476 = vmatpush1.msra.mxu0 %v475
    %477 = vmatprep.subr.mxu0 0.0
    %v478 = vand.u32 %v68, 4294901760
    %479 = vmatpush1.msra.mxu0 %v478
    %480 = vmatprep.subr.mxu0 0.0
    %481 = vmatpush1.msra.mxu0 0.0
    %482 = vmatprep.subr.mxu0 0.0
    %483 = vmatpush1.msra.mxu0 0.0
    %484 = vmatprep.subr.mxu0 0.0
    %485 = vmatpush1.msra.mxu0 0.0
    %486 = vmatprep.subr.mxu0 0.0
    %487 = vmatpush1.msra.mxu0 0.0
    %488 = vmatprep.subr.mxu0 0.0
    %489 = vmatpush1.msra.mxu0 0.0
    %490 = vmatprep.subr.mxu0 0.0
    %491 = vmatpush1.msra.mxu0 0.0
    %492 = vmatprep.subr.mxu0 0.0
    %493 = vmatpush1.msra.mxu0 0.0
    %494 = vmatprep.subr.mxu0 0.0
    %495 = vmatpush1.msra.mxu0 0.0
    %496 = vmatprep.subr.mxu0 0.0
    %497 = vmatpush1.msra.mxu0 0.0
    %498 = vmatprep.subr.mxu0 0.0
    %499 = vmatpush1.msra.mxu0 0.0
    %500 = vmatprep.subr.mxu0 0.0
    %501 = vmatpush1.msra.mxu0 0.0
    %502 = vmatprep.subr.mxu0 0.0
    %503 = vmatpush1.msra.mxu0 0.0
    %504 = vmatprep.subr.mxu0 0.0
    %505 = vmatpush1.msra.mxu0 0.0
    %506 = vmatprep.subr.mxu0 0.0
    %507 = vmatpush1.msra.mxu0 0.0
    %508 = vmatprep.subr.mxu0 0.0
    %509 = vmatpush1.msra.mxu0 0.0
    %510 = vmatprep.subr.mxu0 0.0
    %511 = vmatpush1.msra.mxu0 0.0
    %512 = vmatprep.mubr.f32.mxu0 0.0
    %v513 = vand.u32 %v52, 4294901760
    %v514 = vsub.f32 %v52, %v513
    %v515 = vand.u32 %v514, 4294901760
    %516 = vmatmul.mubr.f32.gmra.mrb[0].mxu0 %v515
    %v517 = vpop.f32.mrb[0].mxu0
    %v518 = vadd.f32 %v429, %v517
    %v519 = vpop.f32.mrb[0].mxu0
    %520 = vdwg.mxu0
    %521 = vmatprep.subr.mxu0 0.0
    %v522 = vand.u32 %v53, 4294901760
    %v523 = vsub.f32 %v53, %v522
    %v524 = vand.u32 %v523, 4294901760
    %525 = vmatpush1.msra.mxu0 %v524
    %526 = vmatprep.subr.mxu0 0.0
    %v527 = vand.u32 %v54, 4294901760
    %v528 = vsub.f32 %v54, %v527
    %v529 = vand.u32 %v528, 4294901760
    %530 = vmatpush1.msra.mxu0 %v529
    %531 = vmatprep.subr.mxu0 0.0
    %v532 = vand.u32 %v55, 4294901760
    %v533 = vsub.f32 %v55, %v532
    %v534 = vand.u32 %v533, 4294901760
    %535 = vmatpush1.msra.mxu0 %v534
    %536 = vmatprep.subr.mxu0 0.0
    %v537 = vand.u32 %v56, 4294901760
    %v538 = vsub.f32 %v56, %v537
    %v539 = vand.u32 %v538, 4294901760
    %540 = vmatpush1.msra.mxu0 %v539
    %541 = vmatprep.subr.mxu0 0.0
    %v542 = vand.u32 %v57, 4294901760
    %v543 = vsub.f32 %v57, %v542
    %v544 = vand.u32 %v543, 4294901760
    %545 = vmatpush1.msra.mxu0 %v544
    %546 = vmatprep.subr.mxu0 0.0
    %v547 = vand.u32 %v58, 4294901760
    %v548 = vsub.f32 %v58, %v547
    %v549 = vand.u32 %v548, 4294901760
    %550 = vmatpush1.msra.mxu0 %v549
    %551 = vmatprep.subr.mxu0 0.0
    %v552 = vand.u32 %v59, 4294901760
    %v553 = vsub.f32 %v59, %v552
    %v554 = vand.u32 %v553, 4294901760
    %555 = vmatpush1.msra.mxu0 %v554
    %556 = vmatprep.subr.mxu0 0.0
    %v557 = vand.u32 %v60, 4294901760
    %v558 = vsub.f32 %v60, %v557
    %v559 = vand.u32 %v558, 4294901760
    %560 = vmatpush1.msra.mxu0 %v559
    %561 = vmatprep.subr.mxu0 0.0
    %v562 = vand.u32 %v61, 4294901760
    %v563 = vsub.f32 %v61, %v562
    %v564 = vand.u32 %v563, 4294901760
    %565 = vmatpush1.msra.mxu0 %v564
    %566 = vmatprep.subr.mxu0 0.0
    %v567 = vand.u32 %v62, 4294901760
    %v568 = vsub.f32 %v62, %v567
    %v569 = vand.u32 %v568, 4294901760
    %570 = vmatpush1.msra.mxu0 %v569
    %571 = vmatprep.subr.mxu0 0.0
    %v572 = vand.u32 %v63, 4294901760
    %v573 = vsub.f32 %v63, %v572
    %v574 = vand.u32 %v573, 4294901760
    %575 = vmatpush1.msra.mxu0 %v574
    %576 = vmatprep.subr.mxu0 0.0
    %v577 = vand.u32 %v64, 4294901760
    %v578 = vsub.f32 %v64, %v577
    %v579 = vand.u32 %v578, 4294901760
    %580 = vmatpush1.msra.mxu0 %v579
    %581 = vmatprep.subr.mxu0 0.0
    %v582 = vand.u32 %v65, 4294901760
    %v583 = vsub.f32 %v65, %v582
    %v584 = vand.u32 %v583, 4294901760
    %585 = vmatpush1.msra.mxu0 %v584
    %586 = vmatprep.subr.mxu0 0.0
    %v587 = vand.u32 %v66, 4294901760
    %v588 = vsub.f32 %v66, %v587
    %v589 = vand.u32 %v588, 4294901760
    %590 = vmatpush1.msra.mxu0 %v589
    %591 = vmatprep.subr.mxu0 0.0
    %v592 = vand.u32 %v67, 4294901760
    %v593 = vsub.f32 %v67, %v592
    %v594 = vand.u32 %v593, 4294901760
    %595 = vmatpush1.msra.mxu0 %v594
    %596 = vmatprep.subr.mxu0 0.0
    %v597 = vand.u32 %v68, 4294901760
    %v598 = vsub.f32 %v68, %v597
    %v599 = vand.u32 %v598, 4294901760
    %600 = vmatpush1.msra.mxu0 %v599
    %601 = vmatprep.subr.mxu0 0.0
    %602 = vmatpush1.msra.mxu0 0.0
    %603 = vmatprep.subr.mxu0 0.0
    %604 = vmatpush1.msra.mxu0 0.0
    %605 = vmatprep.subr.mxu0 0.0
    %606 = vmatpush1.msra.mxu0 0.0
    %607 = vmatprep.subr.mxu0 0.0
    %608 = vmatpush1.msra.mxu0 0.0
    %609 = vmatprep.subr.mxu0 0.0
    %610 = vmatpush1.msra.mxu0 0.0
    %611 = vmatprep.subr.mxu0 0.0
    %612 = vmatpush1.msra.mxu0 0.0
    %613 = vmatprep.subr.mxu0 0.0
    %614 = vmatpush1.msra.mxu0 0.0
    %615 = vmatprep.subr.mxu0 0.0
    %616 = vmatpush1.msra.mxu0 0.0
    %617 = vmatprep.subr.mxu0 0.0
    %618 = vmatpush1.msra.mxu0 0.0
    %619 = vmatprep.subr.mxu0 0.0
    %620 = vmatpush1.msra.mxu0 0.0
    %621 = vmatprep.subr.mxu0 0.0
    %622 = vmatpush1.msra.mxu0 0.0
    %623 = vmatprep.subr.mxu0 0.0
    %624 = vmatpush1.msra.mxu0 0.0
    %625 = vmatprep.subr.mxu0 0.0
    %626 = vmatpush1.msra.mxu0 0.0
    %627 = vmatprep.subr.mxu0 0.0
    %628 = vmatpush1.msra.mxu0 0.0
    %629 = vmatprep.subr.mxu0 0.0
    %630 = vmatpush1.msra.mxu0 0.0
    %631 = vmatprep.subr.mxu0 0.0
    %632 = vmatpush1.msra.mxu0 0.0
    %633 = vmatprep.mubr.f32.mxu0 0.0
    %v634 = vand.u32 %v52, 4294901760
    %635 = vmatmul.mubr.f32.gmra.mrb[0].mxu0 %v634
    %v636 = vpop.f32.mrb[0].mxu0
    %v637 = vadd.f32 %v518, %v636
    %v638 = vpop.f32.mrb[0].mxu0
    %639 = vdwg.mxu0
    %640 = vmatprep.subr.mxu0 0.0
    %v641 = vand.u32 %v53, 4294901760
    %642 = vmatpush1.msra.mxu0 %v641
    %643 = vmatprep.subr.mxu0 0.0
    %v644 = vand.u32 %v54, 4294901760
    %645 = vmatpush1.msra.mxu0 %v644
    %646 = vmatprep.subr.mxu0 0.0
    %v647 = vand.u32 %v55, 4294901760
    %648 = vmatpush1.msra.mxu0 %v647
    %649 = vmatprep.subr.mxu0 0.0
    %v650 = vand.u32 %v56, 4294901760
    %651 = vmatpush1.msra.mxu0 %v650
    %652 = vmatprep.subr.mxu0 0.0
    %v653 = vand.u32 %v57, 4294901760
    %654 = vmatpush1.msra.mxu0 %v653
    %655 = vmatprep.subr.mxu0 0.0
    %v656 = vand.u32 %v58, 4294901760
    %657 = vmatpush1.msra.mxu0 %v656
    %658 = vmatprep.subr.mxu0 0.0
    %v659 = vand.u32 %v59, 4294901760
    %660 = vmatpush1.msra.mxu0 %v659
    %661 = vmatprep.subr.mxu0 0.0
    %v662 = vand.u32 %v60, 4294901760
    %663 = vmatpush1.msra.mxu0 %v662
    %664 = vmatprep.subr.mxu0 0.0
    %v665 = vand.u32 %v61, 4294901760
    %666 = vmatpush1.msra.mxu0 %v665
    %667 = vmatprep.subr.mxu0 0.0
    %v668 = vand.u32 %v62, 4294901760
    %669 = vmatpush1.msra.mxu0 %v668
    %670 = vmatprep.subr.mxu0 0.0
    %v671 = vand.u32 %v63, 4294901760
    %672 = vmatpush1.msra.mxu0 %v671
    %673 = vmatprep.subr.mxu0 0.0
    %v674 = vand.u32 %v64, 4294901760
    %675 = vmatpush1.msra.mxu0 %v674
    %676 = vmatprep.subr.mxu0 0.0
    %v677 = vand.u32 %v65, 4294901760
    %678 = vmatpush1.msra.mxu0 %v677
    %679 = vmatprep.subr.mxu0 0.0
    %v680 = vand.u32 %v66, 4294901760
    %681 = vmatpush1.msra.mxu0 %v680
    %682 = vmatprep.subr.mxu0 0.0
    %v683 = vand.u32 %v67, 4294901760
    %684 = vmatpush1.msra.mxu0 %v683
    %685 = vmatprep.subr.mxu0 0.0
    %v686 = vand.u32 %v68, 4294901760
    %687 = vmatpush1.msra.mxu0 %v686
    %688 = vmatprep.subr.mxu0 0.0
    %689 = vmatpush1.msra.mxu0 0.0
    %690 = vmatprep.subr.mxu0 0.0
    %691 = vmatpush1.msra.mxu0 0.0
    %692 = vmatprep.subr.mxu0 0.0
    %693 = vmatpush1.msra.mxu0 0.0
    %694 = vmatprep.subr.mxu0 0.0
    %695 = vmatpush1.msra.mxu0 0.0
    %696 = vmatprep.subr.mxu0 0.0
    %697 = vmatpush1.msra.mxu0 0.0
    %698 = vmatprep.subr.mxu0 0.0
    %699 = vmatpush1.msra.mxu0 0.0
    %700 = vmatprep.subr.mxu0 0.0
    %701 = vmatpush1.msra.mxu0 0.0
    %702 = vmatprep.subr.mxu0 0.0
    %703 = vmatpush1.msra.mxu0 0.0
    %704 = vmatprep.subr.mxu0 0.0
    %705 = vmatpush1.msra.mxu0 0.0
    %706 = vmatprep.subr.mxu0 0.0
    %707 = vmatpush1.msra.mxu0 0.0
    %708 = vmatprep.subr.mxu0 0.0
    %709 = vmatpush1.msra.mxu0 0.0
    %710 = vmatprep.subr.mxu0 0.0
    %711 = vmatpush1.msra.mxu0 0.0
    %712 = vmatprep.subr.mxu0 0.0
    %713 = vmatpush1.msra.mxu0 0.0
    %714 = vmatprep.subr.mxu0 0.0
    %715 = vmatpush1.msra.mxu0 0.0
    %716 = vmatprep.subr.mxu0 0.0
    %717 = vmatpush1.msra.mxu0 0.0
    %718 = vmatprep.subr.mxu0 0.0
    %719 = vmatpush1.msra.mxu0 0.0
    %720 = vmatprep.mubr.f32.mxu0 0.0
    %v721 = vand.u32 %v52, 4294901760
    %722 = vmatmul.mubr.f32.gmra.mrb[0].mxu0 %v721
    %v723 = vpop.f32.mrb[0].mxu0
    %v724 = vadd.f32 %v637, %v723
    %v725 = vpop.f32.mrb[0].mxu0
    %726 = vdwg.mxu0
    %v727 = vmul.f32 %v85, %v724
    %v728 = vlaneseq
    %v729 = vshrl.u32 %v728, 7
    %v730 = vsub.s32 0, %v729
    %v731 = vrot.slane %v69, %v730
    %v732 = vmul.f32 %v727, %v731
    %v733 = vsub.f32 %v84, 1.0
    %v734 = vlaneseq
    %v735 = vshrl.u32 %v734, 7
    %v736 = vsub.s32 0, %v735
    %v737 = vrot.slane %v70, %v736
    %v738 = vmul.f32 %v733, %v737
    %v739 = vsub.f32 %v732, %v738
    %v740 = vand.u32 2147483647, %v739
    %v741 = vmul.f32 %v740, %v740
    %v742 = vadd.f32 %v741, 1.0
    %v743 = vrsqrt.pop %v742
    %v744 = vmul.f32 %v742, %v743
    %vm745 = vcmp.eq.f32.partialorder %v742, inf
    %v746 = vsel %vm745, %v742, %v744
    %vm747 = vcmp.eq.f32.partialorder %v742, 0.0
    %v748 = vand.u32 %v742, 2147483648
    %v749 = vsel %vm747, %v748, %v746
    %v750 = vadd.f32 %v740, %v749
    %v751 = vlog2.pop %v750
    %v752 = vmul.f32 %v751, 0.6931472
    %vm753 = vcmp.lt.f32.partialorder %v739, 0.0
    %v754 = vsub.f32 0.0, %v752
    %v755 = vsel %vm753, %v754, %v752
    %v756 = vlaneseq
    %v757 = vshrl.u32 %v756, 7
    %v758 = vsub.s32 0, %v757
    %v759 = vrot.slane %v71, %v758
    %v760 = vmul.f32 %v759, %v755
    %v761 = vmul.f32 %v760, 1.442695
    %v762 = vpow.pop %v761
    %v763 = vrcp.pop %v762
    %v764 = vmul.f32 1.0, %v763
    %v765 = vsub.f32 %v762, %v764
    %v766 = vmul.f32 %v765, 0.5
    %v767 = vmul.f32 %v766, %v766
    %768 = vadd.xlane.f32.xlu0 %v767
    %v769 = vpop.xlane.xlu0 %768
    %v770 = vadd.f32 %v769, 1.0
    %v771 = vrsqrt.pop %v770
    %v772 = vmul.f32 %v770, %v771
    %vm773 = vcmp.eq.f32.partialorder %v770, inf
    %v774 = vsel %vm773, %v770, %v772
    %vm775 = vcmp.eq.f32.partialorder %v770, 0.0
    %v776 = vand.u32 %v770, 2147483648
    %v777 = vsel %vm775, %v776, %v774
    %v778 = vadd.f32 %v777, 1.0
    %v779 = vrcp.pop %v778
    %v780 = vmul.f32 1.0, %v779
    %v781 = vrsqrt.pop %v769
    %v782 = vmul.f32 %v769, %v781
    %vm783 = vcmp.eq.f32.partialorder %v769, inf
    %v784 = vsel %vm783, %v769, %v782
    %vm785 = vcmp.eq.f32.partialorder %v769, 0.0
    %v786 = vand.u32 %v769, 2147483648
    %v787 = vsel %vm785, %v786, %v784
    %v788 = vmul.f32 %v787, %v780
    %v789 = vmax.f32 %v788, 1e-15
    %v790 = vrcp.pop %v789
    %v791 = vmul.f32 0.996, %v790
    %v792 = vmin.f32 %v791, 1.0
    %v793 = vmul.f32 %v789, %v792
    %v794 = vadd.f32 %v793, 1.0
    %v795 = vsub.f32 1.0, %v793
    %v796 = vrcp.pop %v795
    %v797 = vmul.f32 %v794, %v796
    %v798 = vlog2.pop %v797
    %v799 = vmul.f32 %v798, 0.6931472
    %v800 = vmul.f32 %v799, 0.5
    %v801 = vrcp.pop %v793
    %v802 = vmul.f32 %v800, %v801
    %v803 = vmul.f32 %v780, %v792
    %v804 = vmul.f32 %v803, %v802
    %v805 = vmul.f32 %v766, %v804
    %806 = vst [vmem:[#allocation8] sm:$0xff] %v805
    // Predicated region
    $region26: #{tpu_custom_call.1} parent=1 // pred_check
      _
    $region27: #{tpu_custom_call.1} parent=1 // pred_check_branch
      %808 = sbr.rel (0) target = $region29
    $region28: #{tpu_custom_call.1} parent=1 // pred_region
      %s810 = ssub.s32 128, 128
      %811 = vsyncadd [#allocation4], %s810
      %s813 = sshll.u32 [#allocation8], 4
      %s814 = int_to_ptr.vmem [resolvable:$true] %s813
      %816 = dma.vmem_to_hbm [thread:$0]  %s814, 128, %s3, [#allocation4]
    $region29: #{tpu_custom_call.1} parent=1 // pred_fallthru
      _
    // Predicated region
    $region30: #{tpu_custom_call.1} parent=1 // pred_check
      _
    $region31: #{tpu_custom_call.1} parent=1 // pred_check_branch
      %818 = sbr.rel (0) target = $region33
    $region32: #{tpu_custom_call.1} parent=1 // pred_region
      %819 = dma.done [#allocation4], 128
    $region33: #{tpu_custom_call.1} parent=1 // pred_fallthru
      _
    %820 = vsyncpa [#allocation3], 1
    %821 = vsyncpa [#allocation6], 1
    %822 = vsyncpa [#allocation4], 1

</llo_original>
